<compile_context>
chip_gen: v5e
topology: v5e:2x2
jax: 0.10.0
libtpu: 0.0.40
codegen_flags: <defaults>
</compile_context>

<pallas_src>
import functools

import jax
import jax.numpy as jnp
from jax import lax
from jax.experimental import pallas as pl
from jax.experimental.pallas import tpu as pltpu

C_IN = 64
C_OUT = 128
EPS = 1e-5

# Fused (resident-y) path is used when its VMEM footprint stays under this budget, so it fits
# every generation's *default* scoped-VMEM limit (v5e 16 MiB) without compiler-flag games.
_FUSED_VMEM_BUDGET = 12 * 1024 * 1024


def _round_up(v, m):
    return (v + m - 1) // m * m


# ---------------- fused path: conv (matmul) + batch stats + BN apply, one kernel ----------------
def _fused_kernel(x_ref, w_ref, gb_ref, o_ref, sum_ref, sq_ref, *, inv_count):
    i = pl.program_id(0)

    @pl.when(i == 0)
    def _():
        sum_ref[...] = jnp.zeros_like(sum_ref)
        sq_ref[...] = jnp.zeros_like(sq_ref)

    # 1x1 conv == per-pixel channel matmul on the MXU: [Cout,Cin] @ [Cin,P] -> [Cout,P].
    y = jnp.dot(w_ref[...], x_ref[0], preferred_element_type=jnp.float32)

    # Un-normalized y stays resident in VMEM (constant-index output block); one HBM write at end.
    o_ref[i] = y

    # Per-channel running sums via full-ref scratch writes (no masked partial-column RMW).
    sum_ref[...] += jnp.sum(y, axis=1, keepdims=True)
    sq_ref[...] += jnp.sum(y * y, axis=1, keepdims=True)

    @pl.when(i == pl.num_programs(0) - 1)
    def _():
        mean = sum_ref[...] * inv_count                                   # [Cout, 1]
        var = jnp.maximum(sq_ref[...] * inv_count - mean * mean, 0.0)     # biased variance
        scale = gb_ref[:, 0:1] * lax.rsqrt(var + EPS)                     # gamma / sqrt(var+eps)
        bias = gb_ref[:, 1:2] - mean * scale                              # beta - mean*scale
        o_ref[...] = (o_ref[...] * scale.reshape(1, C_OUT, 1)
                      + bias.reshape(1, C_OUT, 1))


def _fused_call(xs, wmat, gb, inv_count):
    n, _, p = xs.shape
    return pl.pallas_call(
        functools.partial(_fused_kernel, inv_count=inv_count),
        out_shape=jax.ShapeDtypeStruct((n, C_OUT, p), jnp.float32),
        grid_spec=pltpu.PrefetchScalarGridSpec(
            num_scalar_prefetch=0,
            grid=(n,),
            in_specs=[
                pl.BlockSpec((1, C_IN, p), lambda i: (i, 0, 0)),
                pl.BlockSpec((C_OUT, C_IN), lambda i: (0, 0)),
                pl.BlockSpec((C_OUT, 2), lambda i: (0, 0)),
            ],
            out_specs=pl.BlockSpec((n, C_OUT, p), lambda i: (0, 0, 0)),
            scratch_shapes=[
                pltpu.VMEM((C_OUT, 1), jnp.float32),
                pltpu.VMEM((C_OUT, 1), jnp.float32),
            ],
        ),
        compiler_params=pltpu.CompilerParams(dimension_semantics=("arbitrary",)),
    )(xs, wmat, gb)


# --------------- fallback path (large batches): pass 1 stats -> scale/bias, pass 2 apply --------
def _stats_kernel(x_ref, w_ref, gb_ref, sb_ref, sum_ref, sq_ref, *, inv_count):
    i = pl.program_id(0)

    @pl.when(i == 0)
    def _():
        sum_ref[...] = jnp.zeros_like(sum_ref)
        sq_ref[...] = jnp.zeros_like(sq_ref)

    y = jnp.dot(w_ref[...], x_ref[0], preferred_element_type=jnp.float32)
    sum_ref[...] += jnp.sum(y, axis=1, keepdims=True)
    sq_ref[...] += jnp.sum(y * y, axis=1, keepdims=True)

    @pl.when(i == pl.num_programs(0) - 1)
    def _():
        mean = sum_ref[...] * inv_count
        var = jnp.maximum(sq_ref[...] * inv_count - mean * mean, 0.0)
        scale = gb_ref[:, 0:1] * lax.rsqrt(var + EPS)
        sb_ref[:, 0:1] = scale
        sb_ref[:, 1:2] = gb_ref[:, 1:2] - mean * scale


def _apply_kernel(x_ref, ws_ref, b_ref, o_ref):
    # BN scale already folded into the weights; single broadcast-add for the bias.
    o_ref[0] = (jnp.dot(ws_ref[...], x_ref[0], preferred_element_type=jnp.float32)
                + b_ref[...])


def _two_pass_call(xs, wmat, gb, inv_count):
    n, _, p = xs.shape
    sb = pl.pallas_call(
        functools.partial(_stats_kernel, inv_count=inv_count),
        out_shape=jax.ShapeDtypeStruct((C_OUT, 2), jnp.float32),
        grid_spec=pltpu.PrefetchScalarGridSpec(
            num_scalar_prefetch=0,
            grid=(n,),
            in_specs=[
                pl.BlockSpec((1, C_IN, p), lambda i: (i, 0, 0)),
                pl.BlockSpec((C_OUT, C_IN), lambda i: (0, 0)),
                pl.BlockSpec((C_OUT, 2), lambda i: (0, 0)),
            ],
            out_specs=pl.BlockSpec((C_OUT, 2), lambda i: (0, 0)),
            scratch_shapes=[
                pltpu.VMEM((C_OUT, 1), jnp.float32),
                pltpu.VMEM((C_OUT, 1), jnp.float32),
            ],
        ),
        compiler_params=pltpu.CompilerParams(dimension_semantics=("arbitrary",)),
    )(xs, wmat, gb)

    scale = sb[:, 0:1]                     # [Cout, 1]
    bias = sb[:, 1:2]                      # [Cout, 1]
    w_scaled = wmat * scale                # fold BN scale into the conv weights (tiny XLA op)

    return pl.pallas_call(
        _apply_kernel,
        out_shape=jax.ShapeDtypeStruct((n, C_OUT, p), jnp.float32),
        grid_spec=pltpu.PrefetchScalarGridSpec(
            num_scalar_prefetch=0,
            grid=(n,),
            in_specs=[
                pl.BlockSpec((1, C_IN, p), lambda i: (i, 0, 0)),
                pl.BlockSpec((C_OUT, C_IN), lambda i: (0, 0)),
                pl.BlockSpec((C_OUT, 1), lambda i: (0, 0)),
            ],
            out_specs=pl.BlockSpec((1, C_OUT, p), lambda i: (i, 0, 0)),
        ),
        compiler_params=pltpu.CompilerParams(dimension_semantics=("parallel",)),
    )(xs, w_scaled, bias)


# ------------------------------------------ wrapper ------------------------------------------
def conv1x1s2_bn(x_nchw, weight, gamma, beta, *, force_two_pass=False):
    """x_nchw: [N, 64, H, W]; weight: [128, 64, 1, 1]; gamma/beta: [128] -> [N, 128, Ho, Wo]."""
    n, cin, h, w = x_nchw.shape
    assert cin == C_IN
    ho, wo = (h + 1) // 2, (w + 1) // 2
    p = ho * wo

    # Glue: stride-2 subsample + free reshape flattening pixels onto the lane axis.
    # Kept as a single wrapper-side XLA slice (see header note); channel-major throughout.
    xs = x_nchw[:, :, ::2, ::2].reshape(n, C_IN, p).astype(jnp.float32)          # [N, Cin, P]
    wmat = weight.reshape(C_OUT, C_IN).astype(jnp.float32)                       # [Cout, Cin]
    gb = jnp.stack([gamma.astype(jnp.float32), beta.astype(jnp.float32)], axis=1)  # [Cout, 2]

    inv_count = 1.0 / float(n * p)

    # Rough VMEM footprint of the fused (resident-y) path, worst-case 2x buffering assumed.
    p_pad = _round_up(p, 128)
    fused_bytes = (2 * n * C_OUT * p_pad          # resident un-normalized y
                   + 2 * C_IN * p_pad             # double-buffered per-sample x block
                   + C_OUT * C_IN                 # weights
                   + 6 * C_OUT * 128) * 4         # gb block + stats scratch (lane-padded)

    if force_two_pass or fused_bytes > _FUSED_VMEM_BUDGET:
        out_flat = _two_pass_call(xs, wmat, gb, inv_count)
    else:
        out_flat = _fused_call(xs, wmat, gb, inv_count)

    return out_flat.reshape(n, C_OUT, ho, wo)                                    # [N, 128, Ho, Wo]


def _reference(x_nchw, weight, gamma, beta):
    xs = x_nchw[:, :, ::2, ::2]
    y = jnp.einsum("nchw,oc->nohw", xs, weight.reshape(C_OUT, C_IN))
    mean = jnp.mean(y, axis=(0, 2, 3), keepdims=True)
    var = jnp.mean((y - mean) ** 2, axis=(0, 2, 3), keepdims=True)
    return (y - mean) / jnp.sqrt(var + EPS) * gamma.reshape(1, -1, 1, 1) + beta.reshape(1, -1, 1, 1)


if __name__ == "__main__":
    key = jax.random.PRNGKey(0)
    kx, kw, kg, kb = jax.random.split(key, 4)

    # Small spatial size consistent with the module (channel dims fixed by the weights).
    x = jax.random.normal(kx, (2, C_IN, 16, 16), dtype=jnp.float32)
    weight = jax.random.normal(kw, (C_OUT, C_IN, 1, 1), dtype=jnp.float32) * 0.1
    gamma = 1.0 + 0.1 * jax.random.normal(kg, (C_OUT,), dtype=jnp.float32)
    beta = 0.1 * jax.random.normal(kb, (C_OUT,), dtype=jnp.float32)

    ref = _reference(x, weight, gamma, beta)

    # Primary (fused) path.
    out = jax.block_until_ready(conv1x1s2_bn(x, weight, gamma, beta))
    assert out.shape == (2, C_OUT, 8, 8), out.shape
    assert jnp.allclose(out, ref, atol=1e-4, rtol=1e-4), float(jnp.max(jnp.abs(out - ref)))

    # Exercise the large-batch fallback path once as well (same data, forced).
    out2 = jax.block_until_ready(conv1x1s2_bn(x, weight, gamma, beta, force_two_pass=True))
    assert jnp.allclose(out2, ref, atol=1e-4, rtol=1e-4), float(jnp.max(jnp.abs(out2 - ref)))

    print("KERNEL_OK")
</pallas_src>

<mosaic_0001>
module attributes {stable_mosaic.version = 11 : i64} {
  func.func @_fused_kernel(%arg0: i32, %arg1: memref<1x64x64xf32, #tpu.memory_space<vmem>>, %arg2: memref<128x64xf32, #tpu.memory_space<vmem>>, %arg3: memref<128x2xf32, #tpu.memory_space<vmem>>, %arg4: memref<2x128x64xf32, #tpu.memory_space<vmem>>, %arg5: memref<128x1xf32, #tpu.memory_space<vmem>>, %arg6: memref<128x1xf32, #tpu.memory_space<vmem>>) attributes {dimension_semantics = [#tpu.dimension_semantics<arbitrary>], iteration_bounds = array<i64: 2>, scalar_prefetch = 0 : i64, scratch_operands = 2 : i64, tpu.core_type = #tpu.core_type<tc>, window_params = [{transform_indices = @transform_0, window_bounds = array<i64: 1, 64, 64>}, {pipeline_mode = #tpu.pipeline_mode<synchronous>, transform_indices = @transform_1, window_bounds = array<i64: 128, 64>}, {pipeline_mode = #tpu.pipeline_mode<synchronous>, transform_indices = @transform_2, window_bounds = array<i64: 128, 2>}, {pipeline_mode = #tpu.pipeline_mode<synchronous>, transform_indices = @transform_3, window_bounds = array<i64: 2, 128, 64>}]} {
    %c0_i32 = arith.constant 0 : i32
    %0 = arith.cmpi eq, %arg0, %c0_i32 : i32
    %1 = arith.extui %0 : i1 to i32
    %c0_i32_0 = arith.constant 0 : i32
    %2 = arith.cmpi ne, %1, %c0_i32_0 : i32
    scf.if %2 {
      %cst_18 = arith.constant 0.000000e+00 : f32
      %25 = vector.broadcast %cst_18 : f32 to vector<128x1xf32>
      %c0_19 = arith.constant 0 : index
      %c0_20 = arith.constant 0 : index
      %26 = vector.load %arg5[%c0_19, %c0_20] : memref<128x1xf32, #tpu.memory_space<vmem>>, vector<128x1xf32>
      tpu.vector_store %arg5[%c0_19, %c0_20], %25 {strides = array<i32>} : memref<128x1xf32, #tpu.memory_space<vmem>>, vector<128x1xf32>,
      %cst_21 = arith.constant 0.000000e+00 : f32
      %27 = vector.broadcast %cst_21 : f32 to vector<128x1xf32>
      %c0_22 = arith.constant 0 : index
      %c0_23 = arith.constant 0 : index
      %28 = vector.load %arg6[%c0_22, %c0_23] : memref<128x1xf32, #tpu.memory_space<vmem>>, vector<128x1xf32>
      tpu.vector_store %arg6[%c0_22, %c0_23], %27 {strides = array<i32>} : memref<128x1xf32, #tpu.memory_space<vmem>>, vector<128x1xf32>,
    } else {
    }
    %c0 = arith.constant 0 : index
    %c0_1 = arith.constant 0 : index
    %3 = vector.load %arg2[%c0, %c0_1] : memref<128x64xf32, #tpu.memory_space<vmem>>, vector<128x64xf32>
    %c0_2 = arith.constant 0 : index
    %c0_3 = arith.constant 0 : index
    %c0_4 = arith.constant 0 : index
    %4 = vector.load %arg1[%c0_2, %c0_3, %c0_4] : memref<1x64x64xf32, #tpu.memory_space<vmem>>, vector<1x64x64xf32>
    %5 = vector.shape_cast %4 : vector<1x64x64xf32> to vector<64x64xf32>
    %cst = arith.constant dense<0.000000e+00> : vector<128x64xf32>
    %6 = tpu.matmul %3, %5, %cst {dimension_numbers = #tpu.dot_dimension_numbers<[1], [0], [0], [1], [0, 0, 1, 1], [], []>} : vector<128x64xf32>, vector<64x64xf32>, vector<128x64xf32> -> vector<128x64xf32>
    %7 = arith.index_cast %arg0 : i32 to index
    %c0_5 = arith.constant 0 : index
    %c0_6 = arith.constant 0 : index
    %8 = vector.load %arg4[%7, %c0_5, %c0_6] : memref<2x128x64xf32, #tpu.memory_space<vmem>>, vector<1x128x64xf32>
    %9 = vector.shape_cast %8 : vector<1x128x64xf32> to vector<128x64xf32>
    %10 = vector.shape_cast %6 : vector<128x64xf32> to vector<1x128x64xf32>
    tpu.vector_store %arg4[%7, %c0_5, %c0_6], %10 {strides = array<i32>} : memref<2x128x64xf32, #tpu.memory_space<vmem>>, vector<1x128x64xf32>,
    %c0_7 = arith.constant 0 : index
    %c0_8 = arith.constant 0 : index
    %11 = vector.load %arg5[%c0_7, %c0_8] : memref<128x1xf32, #tpu.memory_space<vmem>>, vector<128x1xf32>
    %cst_9 = arith.constant dense<0.000000e+00> : vector<128xf32>
    %12 = vector.multi_reduction <add>, %6, %cst_9 [1] : vector<128x64xf32> to vector<128xf32>
    %13 = vector.shape_cast %12 : vector<128xf32> to vector<128x1xf32>
    %14 = arith.addf %11, %13 : vector<128x1xf32>
    %c0_10 = arith.constant 0 : index
    %c0_11 = arith.constant 0 : index
    %15 = vector.load %arg5[%c0_10, %c0_11] : memref<128x1xf32, #tpu.memory_space<vmem>>, vector<128x1xf32>
    tpu.vector_store %arg5[%c0_10, %c0_11], %14 {strides = array<i32>} : memref<128x1xf32, #tpu.memory_space<vmem>>, vector<128x1xf32>,
    %c0_12 = arith.constant 0 : index
    %c0_13 = arith.constant 0 : index
    %16 = vector.load %arg6[%c0_12, %c0_13] : memref<128x1xf32, #tpu.memory_space<vmem>>, vector<128x1xf32>
    %17 = arith.mulf %6, %6 : vector<128x64xf32>
    %cst_14 = arith.constant dense<0.000000e+00> : vector<128xf32>
    %18 = vector.multi_reduction <add>, %17, %cst_14 [1] : vector<128x64xf32> to vector<128xf32>
    %19 = vector.shape_cast %18 : vector<128xf32> to vector<128x1xf32>
    %20 = arith.addf %16, %19 : vector<128x1xf32>
    %c0_15 = arith.constant 0 : index
    %c0_16 = arith.constant 0 : index
    %21 = vector.load %arg6[%c0_15, %c0_16] : memref<128x1xf32, #tpu.memory_space<vmem>>, vector<128x1xf32>
    tpu.vector_store %arg6[%c0_15, %c0_16], %20 {strides = array<i32>} : memref<128x1xf32, #tpu.memory_space<vmem>>, vector<128x1xf32>,
    %c1_i32 = arith.constant 1 : i32
    %22 = arith.cmpi eq, %arg0, %c1_i32 : i32
    %23 = arith.extui %22 : i1 to i32
    %c0_i32_17 = arith.constant 0 : i32
    %24 = arith.cmpi ne, %23, %c0_i32_17 : i32
    scf.if %24 {
      %c0_18 = arith.constant 0 : index
      %c0_19 = arith.constant 0 : index
      %25 = vector.load %arg5[%c0_18, %c0_19] : memref<128x1xf32, #tpu.memory_space<vmem>>, vector<128x1xf32>
      %cst_20 = arith.constant 7.812500e-03 : f32
      %26 = vector.broadcast %cst_20 : f32 to vector<128x1xf32>
      %27 = arith.mulf %25, %26 : vector<128x1xf32>
      %c0_21 = arith.constant 0 : index
      %c0_22 = arith.constant 0 : index
      %28 = vector.load %arg6[%c0_21, %c0_22] : memref<128x1xf32, #tpu.memory_space<vmem>>, vector<128x1xf32>
      %cst_23 = arith.constant 7.812500e-03 : f32
      %29 = vector.broadcast %cst_23 : f32 to vector<128x1xf32>
      %30 = arith.mulf %28, %29 : vector<128x1xf32>
      %31 = arith.mulf %27, %27 : vector<128x1xf32>
      %32 = arith.subf %30, %31 : vector<128x1xf32>
      %cst_24 = arith.constant 0.000000e+00 : f32
      %33 = vector.broadcast %cst_24 : f32 to vector<128x1xf32>
      %34 = arith.maximumf %32, %33 : vector<128x1xf32>
      %c0_25 = arith.constant 0 : index
      %c0_26 = arith.constant 0 : index
      %35 = vector.load %arg3[%c0_25, %c0_26] : memref<128x2xf32, #tpu.memory_space<vmem>>, vector<128x1xf32>
      %cst_27 = arith.constant 9.99999974E-6 : f32
      %36 = vector.broadcast %cst_27 : f32 to vector<128x1xf32>
      %37 = arith.addf %34, %36 : vector<128x1xf32>
      %38 = math.rsqrt %37 : vector<128x1xf32>
      %39 = arith.mulf %35, %38 : vector<128x1xf32>
      %c0_28 = arith.constant 0 : index
      %c1 = arith.constant 1 : index
      %40 = vector.load %arg3[%c0_28, %c1] : memref<128x2xf32, #tpu.memory_space<vmem>>, vector<128x1xf32>
      %41 = arith.mulf %27, %39 : vector<128x1xf32>
      %42 = arith.subf %40, %41 : vector<128x1xf32>
      %c0_29 = arith.constant 0 : index
      %c0_30 = arith.constant 0 : index
      %c0_31 = arith.constant 0 : index
      %43 = vector.load %arg4[%c0_29, %c0_30, %c0_31] : memref<2x128x64xf32, #tpu.memory_space<vmem>>, vector<2x128x64xf32>
      %44 = vector.shape_cast %39 : vector<128x1xf32> to vector<1x128x1xf32>
      %45 = vector.broadcast %44 : vector<1x128x1xf32> to vector<2x128x64xf32>
      %46 = arith.mulf %43, %45 : vector<2x128x64xf32>
      %47 = vector.shape_cast %42 : vector<128x1xf32> to vector<1x128x1xf32>
      %48 = vector.broadcast %47 : vector<1x128x1xf32> to vector<2x128x64xf32>
      %49 = arith.addf %46, %48 : vector<2x128x64xf32>
      %c0_32 = arith.constant 0 : index
      %c0_33 = arith.constant 0 : index
      %c0_34 = arith.constant 0 : index
      %50 = vector.load %arg4[%c0_32, %c0_33, %c0_34] : memref<2x128x64xf32, #tpu.memory_space<vmem>>, vector<2x128x64xf32>
      tpu.vector_store %arg4[%c0_32, %c0_33, %c0_34], %49 {strides = array<i32>} : memref<2x128x64xf32, #tpu.memory_space<vmem>>, vector<2x128x64xf32>,
    } else {
    }
    return
  }
  func.func @transform_0(%arg0: i32) -> (i32, i32, i32) {
    %c0_i32 = arith.constant 0 : i32
    %c0_i32_0 = arith.constant 0 : i32
    %c0_i32_1 = arith.constant 0 : i32
    return %arg0, %c0_i32, %c0_i32_0 : i32, i32, i32
  }
  func.func @transform_1(%arg0: i32) -> (i32, i32) {
    %c0_i32 = arith.constant 0 : i32
    %c0_i32_0 = arith.constant 0 : i32
    %c0_i32_1 = arith.constant 0 : i32
    return %c0_i32, %c0_i32_0 : i32, i32
  }
  func.func @transform_2(%arg0: i32) -> (i32, i32) {
    %c0_i32 = arith.constant 0 : i32
    %c0_i32_0 = arith.constant 0 : i32
    %c0_i32_1 = arith.constant 0 : i32
    return %c0_i32, %c0_i32_0 : i32, i32
  }
  func.func @transform_3(%arg0: i32) -> (i32, i32, i32) {
    %c0_i32 = arith.constant 0 : i32
    %c0_i32_0 = arith.constant 0 : i32
    %c0_i32_1 = arith.constant 0 : i32
    %c0_i32_2 = arith.constant 0 : i32
    return %c0_i32, %c0_i32_0, %c0_i32_1 : i32, i32, i32
  }
}

</mosaic_0001>

<llo_original>
// kernel: tpu_custom_call.1
$region0: #{tpu_custom_call.1}
  #allocation0 [shape = 'u32[]', space=smem, size = 0x4, offset = 0x4, fixed_abs, tag = 'smem constant byte address 0x4 - core index']
  #allocation1 [shape = 'u32[72,128]{1,0:T(1,128)}', space=vmem, size = 0x9000, scoped, tag = 'internal scratch']
  #allocation2 [shape = 'f32[128,1]{1,0:T(8,128)}', space=vmem, size = 0x10000, scoped, tag = 'scratch operand']
  #allocation3 [shape = 'f32[128,1]{1,0:T(8,128)}', space=vmem, size = 0x10000, scoped, tag = 'scratch operand']
  %s0 = inlined_call_operand.vmem [shape: f32[2,64,64], index: 0, kind: input, shape index: {}]
  %s1 = inlined_call_operand.vmem [shape: f32[128,64], index: 1, kind: input, shape index: {}]
  %s2 = inlined_call_operand.vmem [shape: f32[128,2], index: 2, kind: input, shape index: {}]
  %s3 = inlined_call_operand.vmem [shape: f32[2,128,64], index: 3, kind: output, shape index: {}]
  %s4 = sld [smem:[#allocation0]]
  $region53: #{tpu_custom_call.1} parent=0
    _
  %s6 = ssub.s32 1, %s4
  %s7 = scalar_select 0, %s6, %s4
  loop: start=0, step=1, limit=4
  $region2: #{tpu_custom_call.1} parent=0 // loop_pre_header
    _
  $region3: #{tpu_custom_call.1} parent=0 // loop_header
    %s9 = sphi 0, %s13
    %p10 = scmp.ge.s32.totalorder %s9, 4
    %s19 = sphi 0, %s21
    %s22 = sphi 0, %s19
    %s23 = sphi 0, %s22
    %s39 = sphi 0, %s23
    %s43 = sphi 0, %s43
    %s45 = sphi 0, %s43
    %s46 = sphi 0, %s45
    %s60 = sphi 0, %s46
    %s64 = sphi 0, %s64
    %s66 = sphi 0, %s64
    %s67 = sphi 0, %s66
    %s81 = sphi 0, %s67
    %s85 = sphi 0, %s85
    %s87 = sphi 0, %s85
    %s88 = sphi 0, %s87
    %s102 = sphi 0, %s88
  $region4: #{tpu_custom_call.1} parent=0 // loop_header_branch
    %12 = sbr.rel (%p10) target = $region8
  $region5: #{tpu_custom_call.1} parent=0 // loop_body
    %s14 = ssub.s32 %s9, 1
    %s15 = ssub.s32 %s9, 2
    %s16 = sadd.s32 %s9, 1
    %s17 = ssub.s32 %s9, %s16
    %p18 = scmp.eq.s32.totalorder %s17, 0
    %s20 = sadd.s32 %s19, 1
    %s21 = scalar_select %p18, %s19, %s20
    %p24 = pneg %p18
    %p25 = scmp.eq.s32.totalorder %s9, 1
    %p26 = por %p24, %p25
    %p27 = scmp.ne.s32.totalorder %s19, %s22
    %p28 = scmp.eq.s32.totalorder %s9, 0
    %p29 = por %p27, %p28
    %p30 = scmp.ne.s32.totalorder %s19, %s22
    %p31 = scmp.eq.s32.totalorder %s14, 1
    %p32 = por %p30, %p31
    %p33 = scmp.ne.s32.totalorder %s22, %s23
    %p34 = scmp.eq.s32.totalorder %s14, 0
    %p35 = por %p33, %p34
    %p36 = scmp.ne.s32.totalorder %s22, %s23
    %p37 = scmp.eq.s32.totalorder %s15, 1
    %p38 = por %p36, %p37
    %p40 = scmp.ne.s32.totalorder %s23, %s39
    %p41 = scmp.eq.s32.totalorder %s15, 0
    %p42 = por %p40, %p41
    %s44 = sadd.s32 %s43, 1
    %p47 = scmp.eq.s32.totalorder %s9, 1
    %p48 = scmp.ne.s32.totalorder %s43, %s45
    %p49 = scmp.eq.s32.totalorder %s9, 0
    %p50 = por %p48, %p49
    %p51 = scmp.ne.s32.totalorder %s43, %s45
    %p52 = scmp.eq.s32.totalorder %s14, 1
    %p53 = por %p51, %p52
    %p54 = scmp.ne.s32.totalorder %s45, %s46
    %p55 = scmp.eq.s32.totalorder %s14, 0
    %p56 = por %p54, %p55
    %p57 = scmp.ne.s32.totalorder %s45, %s46
    %p58 = scmp.eq.s32.totalorder %s15, 1
    %p59 = por %p57, %p58
    %p61 = scmp.ne.s32.totalorder %s46, %s60
    %p62 = scmp.eq.s32.totalorder %s15, 0
    %p63 = por %p61, %p62
    %s65 = sadd.s32 %s64, 1
    %p68 = scmp.eq.s32.totalorder %s9, 1
    %p69 = scmp.ne.s32.totalorder %s64, %s66
    %p70 = scmp.eq.s32.totalorder %s9, 0
    %p71 = por %p69, %p70
    %p72 = scmp.ne.s32.totalorder %s64, %s66
    %p73 = scmp.eq.s32.totalorder %s14, 1
    %p74 = por %p72, %p73
    %p75 = scmp.ne.s32.totalorder %s66, %s67
    %p76 = scmp.eq.s32.totalorder %s14, 0
    %p77 = por %p75, %p76
    %p78 = scmp.ne.s32.totalorder %s66, %s67
    %p79 = scmp.eq.s32.totalorder %s15, 1
    %p80 = por %p78, %p79
    %p82 = scmp.ne.s32.totalorder %s67, %s81
    %p83 = scmp.eq.s32.totalorder %s15, 0
    %p84 = por %p82, %p83
    %s86 = sadd.s32 %s85, 1
    %p89 = scmp.eq.s32.totalorder %s9, 1
    %p90 = scmp.ne.s32.totalorder %s85, %s87
    %p91 = scmp.eq.s32.totalorder %s9, 0
    %p92 = por %p90, %p91
    %p93 = scmp.ne.s32.totalorder %s85, %s87
    %p94 = scmp.eq.s32.totalorder %s14, 1
    %p95 = por %p93, %p94
    %p96 = scmp.ne.s32.totalorder %s87, %s88
    %p97 = scmp.eq.s32.totalorder %s14, 0
    %p98 = por %p96, %p97
    %p99 = scmp.ne.s32.totalorder %s87, %s88
    %p100 = scmp.eq.s32.totalorder %s15, 1
    %p101 = por %p99, %p100
    %p103 = scmp.ne.s32.totalorder %s88, %s102
    %p104 = scmp.eq.s32.totalorder %s15, 0
    %p105 = por %p103, %p104
    %p106 = scmp.le.s32.totalorder 1, %s9
    %p107 = scmp.lt.s32.totalorder %s9, 3
    %p108 = pnand %p106, %p107
    %p109 = pneg %p108
    // Predicated region
    $region9: #{tpu_custom_call.1} parent=5 // pred_check
      _
    $region10: #{tpu_custom_call.1} parent=5 // pred_check_branch
      %111 = sbr.rel (%p108) target = $region12
    $region11: #{tpu_custom_call.1} parent=5 // pred_region
      %s112 = ssub.s32 %s9, 1
      // Predicated region
      $region13: #{tpu_custom_call.1} parent=11 // pred_check
        %p113 = pneg %p56
      $region14: #{tpu_custom_call.1} parent=11 // pred_check_branch
        %115 = sbr.rel (%p113) target = $region16
      $region15: #{tpu_custom_call.1} parent=11 // pred_region
        _
      $region16: #{tpu_custom_call.1} parent=11 // pred_fallthru
        _
      // Predicated region
      $region17: #{tpu_custom_call.1} parent=11 // pred_check
        %p116 = pneg %p77
      $region18: #{tpu_custom_call.1} parent=11 // pred_check_branch
        %118 = sbr.rel (%p116) target = $region20
      $region19: #{tpu_custom_call.1} parent=11 // pred_region
        _
      $region20: #{tpu_custom_call.1} parent=11 // pred_fallthru
        _
    $region12: #{tpu_custom_call.1} parent=5 // pred_fallthru
      _
    %p119 = scmp.lt.s32.totalorder %s9, 2
    // Predicated region
    $region21: #{tpu_custom_call.1} parent=5 // pred_check
      %p120 = pneg %p119
    $region22: #{tpu_custom_call.1} parent=5 // pred_check_branch
      %122 = sbr.rel (%p120) target = $region24
    $region23: #{tpu_custom_call.1} parent=5 // pred_region
      // Predicated region
      $region25: #{tpu_custom_call.1} parent=23 // pred_check
        %p123 = pneg %p29
      $region26: #{tpu_custom_call.1} parent=23 // pred_check_branch
        %125 = sbr.rel (%p123) target = $region28
      $region27: #{tpu_custom_call.1} parent=23 // pred_region
        %p126 = scmp.lt.s32.totalorder %s9, 1
        %s127 = scalar_select %p126, %s9, 1
        %s128 = smul.addr %s127, 8
        %s129 = smul.addr %s128, 8
        %s130 = scalar_lea.vmem %s0, %s129
      $region28: #{tpu_custom_call.1} parent=23 // pred_fallthru
        _
    $region24: #{tpu_custom_call.1} parent=5 // pred_fallthru
      _
    %p131 = scmp.le.s32.totalorder 1, %s9
    %p132 = scmp.lt.s32.totalorder %s9, 3
    %p133 = pnand %p131, %p132
    %p134 = pneg %p133
    // Predicated region
    $region29: #{tpu_custom_call.1} parent=5 // pred_check
      _
    $region30: #{tpu_custom_call.1} parent=5 // pred_check_branch
      %136 = sbr.rel (%p133) target = $region32
    $region31: #{tpu_custom_call.1} parent=5 // pred_region
      %s137 = ssub.s32 %s9, 1
      %p138 = scmp.lt.s32.totalorder %s14, 1
      %s139 = scalar_select %p138, %s14, 1
      %s140 = smul.addr %s139, 8
      %s141 = smul.addr %s140, 8
      %s142 = scalar_lea.vmem %s0, %s141
      %p143 = pneg %p35
      %p144 = pneg %p32
      %p145 = pneg %p56
      %p146 = pneg %p53
      %p147 = pneg %p77
      %p148 = pneg %p74
      %p149 = pneg %p98
      %p150 = pneg %p95
      %p151 = scmp.lt.s32.totalorder %s14, 1
      %s152 = scalar_select %p151, %s14, 1
      %s153 = smul.addr %s152, 8
      %s154 = smul.addr %s153, 8
      %s155 = scalar_lea.vmem %s0, %s154
      %p156 = scmp.eq.s32.totalorder %s14, 0
      // Predicated region
      $region33: #{tpu_custom_call.1} parent=31 // pred_check
        %p157 = pneg %p156
      $region34: #{tpu_custom_call.1} parent=31 // pred_check_branch
        %159 = sbr.rel (%p157) target = $region36
      $region35: #{tpu_custom_call.1} parent=31 // pred_region
        %vm160 = vcmask 7168
        %161 = vst.msk [vmem:[#allocation2] sm:$0xff] %vm160, 0.0
        %162 = vst.msk [vmem:[#allocation2 + $0x8] sm:$0xff] %vm160, 0.0
        %163 = vst.msk [vmem:[#allocation2 + $0x10] sm:$0xff] %vm160, 0.0
        %164 = vst.msk [vmem:[#allocation2 + $0x18] sm:$0xff] %vm160, 0.0
        %165 = vst.msk [vmem:[#allocation2 + $0x20] sm:$0xff] %vm160, 0.0
        %166 = vst.msk [vmem:[#allocation2 + $0x28] sm:$0xff] %vm160, 0.0
        %167 = vst.msk [vmem:[#allocation2 + $0x30] sm:$0xff] %vm160, 0.0
        %168 = vst.msk [vmem:[#allocation2 + $0x38] sm:$0xff] %vm160, 0.0
        %169 = vst.msk [vmem:[#allocation2 + $0x40] sm:$0xff] %vm160, 0.0
        %170 = vst.msk [vmem:[#allocation2 + $0x48] sm:$0xff] %vm160, 0.0
        %171 = vst.msk [vmem:[#allocation2 + $0x50] sm:$0xff] %vm160, 0.0
        %172 = vst.msk [vmem:[#allocation2 + $0x58] sm:$0xff] %vm160, 0.0
        %173 = vst.msk [vmem:[#allocation2 + $0x60] sm:$0xff] %vm160, 0.0
        %174 = vst.msk [vmem:[#allocation2 + $0x68] sm:$0xff] %vm160, 0.0
        %175 = vst.msk [vmem:[#allocation2 + $0x70] sm:$0xff] %vm160, 0.0
        %176 = vst.msk [vmem:[#allocation2 + $0x78] sm:$0xff] %vm160, 0.0
        %177 = vst.msk [vmem:[#allocation3] sm:$0xff] %vm160, 0.0
        %178 = vst.msk [vmem:[#allocation3 + $0x8] sm:$0xff] %vm160, 0.0
        %179 = vst.msk [vmem:[#allocation3 + $0x10] sm:$0xff] %vm160, 0.0
        %180 = vst.msk [vmem:[#allocation3 + $0x18] sm:$0xff] %vm160, 0.0
        %181 = vst.msk [vmem:[#allocation3 + $0x20] sm:$0xff] %vm160, 0.0
        %182 = vst.msk [vmem:[#allocation3 + $0x28] sm:$0xff] %vm160, 0.0
        %183 = vst.msk [vmem:[#allocation3 + $0x30] sm:$0xff] %vm160, 0.0
        %184 = vst.msk [vmem:[#allocation3 + $0x38] sm:$0xff] %vm160, 0.0
        %185 = vst.msk [vmem:[#allocation3 + $0x40] sm:$0xff] %vm160, 0.0
        %186 = vst.msk [vmem:[#allocation3 + $0x48] sm:$0xff] %vm160, 0.0
        %187 = vst.msk [vmem:[#allocation3 + $0x50] sm:$0xff] %vm160, 0.0
        %188 = vst.msk [vmem:[#allocation3 + $0x58] sm:$0xff] %vm160, 0.0
        %189 = vst.msk [vmem:[#allocation3 + $0x60] sm:$0xff] %vm160, 0.0
        %190 = vst.msk [vmem:[#allocation3 + $0x68] sm:$0xff] %vm160, 0.0
        %191 = vst.msk [vmem:[#allocation3 + $0x70] sm:$0xff] %vm160, 0.0
        %192 = vst.msk [vmem:[#allocation3 + $0x78] sm:$0xff] %vm160, 0.0
      $region36: #{tpu_custom_call.1} parent=31 // pred_fallthru
        _
      %v193 = vld [vmem:[%s1] sm:$0xff]
      %v194 = vld [vmem:[%s1 + $0x8] sm:$0xff]
      %v195 = vld [vmem:[%s1 + $0x10] sm:$0xff]
      %v196 = vld [vmem:[%s1 + $0x18] sm:$0xff]
      %v197 = vld [vmem:[%s1 + $0x20] sm:$0xff]
      %v198 = vld [vmem:[%s1 + $0x28] sm:$0xff]
      %v199 = vld [vmem:[%s1 + $0x30] sm:$0xff]
      %v200 = vld [vmem:[%s1 + $0x38] sm:$0xff]
      %v201 = vld [vmem:[%s1 + $0x40] sm:$0xff]
      %v202 = vld [vmem:[%s1 + $0x48] sm:$0xff]
      %v203 = vld [vmem:[%s1 + $0x50] sm:$0xff]
      %v204 = vld [vmem:[%s1 + $0x58] sm:$0xff]
      %v205 = vld [vmem:[%s1 + $0x60] sm:$0xff]
      %v206 = vld [vmem:[%s1 + $0x68] sm:$0xff]
      %v207 = vld [vmem:[%s1 + $0x70] sm:$0xff]
      %v208 = vld [vmem:[%s1 + $0x78] sm:$0xff]
      %v209 = vld [vmem:[%s155] sm:$0xff]
      %v210 = vld [vmem:[%s155 + $0x8] sm:$0xff]
      %v211 = vld [vmem:[%s155 + $0x10] sm:$0xff]
      %v212 = vld [vmem:[%s155 + $0x18] sm:$0xff]
      %v213 = vld [vmem:[%s155 + $0x20] sm:$0xff]
      %v214 = vld [vmem:[%s155 + $0x28] sm:$0xff]
      %v215 = vld [vmem:[%s155 + $0x30] sm:$0xff]
      %v216 = vld [vmem:[%s155 + $0x38] sm:$0xff]
      %vm217 = vcmask 523264
      %v219 = vsel %vm217, %v193, 0
      %v222 = vsel %vm217, %v194, 0
      %v225 = vsel %vm217, %v195, 0
      %v228 = vsel %vm217, %v196, 0
      %v231 = vsel %vm217, %v197, 0
      %v234 = vsel %vm217, %v198, 0
      %v237 = vsel %vm217, %v199, 0
      %v240 = vsel %vm217, %v200, 0
      %v243 = vsel %vm217, %v201, 0
      %v246 = vsel %vm217, %v202, 0
      %v249 = vsel %vm217, %v203, 0
      %v252 = vsel %vm217, %v204, 0
      %v255 = vsel %vm217, %v205, 0
      %v258 = vsel %vm217, %v206, 0
      %v261 = vsel %vm217, %v207, 0
      %v264 = vsel %vm217, %v208, 0
      %266 = vmatpush.msra.mxu0 0.0
      %267 = vmatpush.msra.mxu0 0.0
      %268 = vmatpush.msra.mxu0 0.0
      %269 = vmatpush.msra.mxu0 0.0
      %270 = vmatpush.msra.mxu0 0.0
      %271 = vmatpush.msra.mxu0 0.0
      %272 = vmatpush.msra.mxu0 0.0
      %273 = vmatpush.msra.mxu0 0.0
      %274 = vmatpush.msra.mxu0 %v216
      %275 = vmatpush.msra.mxu0 %v215
      %276 = vmatpush.msra.mxu0 %v214
      %277 = vmatpush.msra.mxu0 %v213
      %278 = vmatpush.msra.mxu0 %v212
      %279 = vmatpush.msra.mxu0 %v211
      %280 = vmatpush.msra.mxu0 %v210
      %281 = vmatpush.msra.mxu0 %v209
      %282 = vmatmul.f32.gmra.mxu0 %v219
      %v283 = vpop.f32.mrf.mxu0
      %v284 = vadd.f32 0.0, %v283
      %285 = vmatmul.f32.gmra.mxu0 %v222
      %v286 = vpop.f32.mrf.mxu0
      %v287 = vadd.f32 0.0, %v286
      %288 = vmatmul.f32.gmra.mxu0 %v225
      %v289 = vpop.f32.mrf.mxu0
      %v290 = vadd.f32 0.0, %v289
      %291 = vmatmul.f32.gmra.mxu0 %v228
      %v292 = vpop.f32.mrf.mxu0
      %v293 = vadd.f32 0.0, %v292
      %294 = vmatmul.f32.gmra.mxu0 %v231
      %v295 = vpop.f32.mrf.mxu0
      %v296 = vadd.f32 0.0, %v295
      %297 = vmatmul.f32.gmra.mxu0 %v234
      %v298 = vpop.f32.mrf.mxu0
      %v299 = vadd.f32 0.0, %v298
      %300 = vmatmul.f32.gmra.mxu0 %v237
      %v301 = vpop.f32.mrf.mxu0
      %v302 = vadd.f32 0.0, %v301
      %303 = vmatmul.f32.gmra.mxu0 %v240
      %v304 = vpop.f32.mrf.mxu0
      %v305 = vadd.f32 0.0, %v304
      %306 = vmatmul.f32.gmra.mxu0 %v243
      %v307 = vpop.f32.mrf.mxu0
      %v308 = vadd.f32 0.0, %v307
      %309 = vmatmul.f32.gmra.mxu0 %v246
      %v310 = vpop.f32.mrf.mxu0
      %v311 = vadd.f32 0.0, %v310
      %312 = vmatmul.f32.gmra.mxu0 %v249
      %v313 = vpop.f32.mrf.mxu0
      %v314 = vadd.f32 0.0, %v313
      %315 = vmatmul.f32.gmra.mxu0 %v252
      %v316 = vpop.f32.mrf.mxu0
      %v317 = vadd.f32 0.0, %v316
      %318 = vmatmul.f32.gmra.mxu0 %v255
      %v319 = vpop.f32.mrf.mxu0
      %v320 = vadd.f32 0.0, %v319
      %321 = vmatmul.f32.gmra.mxu0 %v258
      %v322 = vpop.f32.mrf.mxu0
      %v323 = vadd.f32 0.0, %v322
      %324 = vmatmul.f32.gmra.mxu0 %v261
      %v325 = vpop.f32.mrf.mxu0
      %v326 = vadd.f32 0.0, %v325
      %327 = vmatmul.f32.gmra.mxu0 %v264
      %v328 = vpop.f32.mrf.mxu0
      %v329 = vadd.f32 0.0, %v328
      %330 = vdwg.mxu0
      %s331 = smul.u32 %s14, 128
      %s332 = scalar_lea.vmem %s3, %s331
      %333 = vst.msk [vmem:[%s332] sm:$0xff] %vm217, %v284
      %334 = vst.msk [vmem:[%s332 + $0x8] sm:$0xff] %vm217, %v287
      %335 = vst.msk [vmem:[%s332 + $0x10] sm:$0xff] %vm217, %v290
      %336 = vst.msk [vmem:[%s332 + $0x18] sm:$0xff] %vm217, %v293
      %337 = vst.msk [vmem:[%s332 + $0x20] sm:$0xff] %vm217, %v296
      %338 = vst.msk [vmem:[%s332 + $0x28] sm:$0xff] %vm217, %v299
      %339 = vst.msk [vmem:[%s332 + $0x30] sm:$0xff] %vm217, %v302
      %340 = vst.msk [vmem:[%s332 + $0x38] sm:$0xff] %vm217, %v305
      %341 = vst.msk [vmem:[%s332 + $0x40] sm:$0xff] %vm217, %v308
      %342 = vst.msk [vmem:[%s332 + $0x48] sm:$0xff] %vm217, %v311
      %343 = vst.msk [vmem:[%s332 + $0x50] sm:$0xff] %vm217, %v314
      %344 = vst.msk [vmem:[%s332 + $0x58] sm:$0xff] %vm217, %v317
      %345 = vst.msk [vmem:[%s332 + $0x60] sm:$0xff] %vm217, %v320
      %346 = vst.msk [vmem:[%s332 + $0x68] sm:$0xff] %vm217, %v323
      %347 = vst.msk [vmem:[%s332 + $0x70] sm:$0xff] %vm217, %v326
      %348 = vst.msk [vmem:[%s332 + $0x78] sm:$0xff] %vm217, %v329
      %v349 = vld [vmem:[#allocation2] sm:$0xff]
      %v350 = vld [vmem:[#allocation2 + $0x8] sm:$0xff]
      %v351 = vld [vmem:[#allocation2 + $0x10] sm:$0xff]
      %v352 = vld [vmem:[#allocation2 + $0x18] sm:$0xff]
      %v353 = vld [vmem:[#allocation2 + $0x20] sm:$0xff]
      %v354 = vld [vmem:[#allocation2 + $0x28] sm:$0xff]
      %v355 = vld [vmem:[#allocation2 + $0x30] sm:$0xff]
      %v356 = vld [vmem:[#allocation2 + $0x38] sm:$0xff]
      %v357 = vld [vmem:[#allocation2 + $0x40] sm:$0xff]
      %v358 = vld [vmem:[#allocation2 + $0x48] sm:$0xff]
      %v359 = vld [vmem:[#allocation2 + $0x50] sm:$0xff]
      %v360 = vld [vmem:[#allocation2 + $0x58] sm:$0xff]
      %v361 = vld [vmem:[#allocation2 + $0x60] sm:$0xff]
      %v362 = vld [vmem:[#allocation2 + $0x68] sm:$0xff]
      %v363 = vld [vmem:[#allocation2 + $0x70] sm:$0xff]
      %v364 = vld [vmem:[#allocation2 + $0x78] sm:$0xff]
      %v365 = vsel %vm217, %v284, 0.0
      %366 = vadd.xlane.f32.xlu0 %v365
      %v367 = vpop.xlane.xlu0 %366
      %v368 = vsel %vm217, %v287, 0.0
      %369 = vadd.xlane.f32.xlu0 %v368
      %v370 = vpop.xlane.xlu0 %369
      %v371 = vsel %vm217, %v290, 0.0
      %372 = vadd.xlane.f32.xlu0 %v371
      %v373 = vpop.xlane.xlu0 %372
      %v374 = vsel %vm217, %v293, 0.0
      %375 = vadd.xlane.f32.xlu0 %v374
      %v376 = vpop.xlane.xlu0 %375
      %v377 = vsel %vm217, %v296, 0.0
      %378 = vadd.xlane.f32.xlu0 %v377
      %v379 = vpop.xlane.xlu0 %378
      %v380 = vsel %vm217, %v299, 0.0
      %381 = vadd.xlane.f32.xlu0 %v380
      %v382 = vpop.xlane.xlu0 %381
      %v383 = vsel %vm217, %v302, 0.0
      %384 = vadd.xlane.f32.xlu0 %v383
      %v385 = vpop.xlane.xlu0 %384
      %v386 = vsel %vm217, %v305, 0.0
      %387 = vadd.xlane.f32.xlu0 %v386
      %v388 = vpop.xlane.xlu0 %387
      %v389 = vsel %vm217, %v308, 0.0
      %390 = vadd.xlane.f32.xlu0 %v389
      %v391 = vpop.xlane.xlu0 %390
      %v392 = vsel %vm217, %v311, 0.0
      %393 = vadd.xlane.f32.xlu0 %v392
      %v394 = vpop.xlane.xlu0 %393
      %v395 = vsel %vm217, %v314, 0.0
      %396 = vadd.xlane.f32.xlu0 %v395
      %v397 = vpop.xlane.xlu0 %396
      %v398 = vsel %vm217, %v317, 0.0
      %399 = vadd.xlane.f32.xlu0 %v398
      %v400 = vpop.xlane.xlu0 %399
      %v401 = vsel %vm217, %v320, 0.0
      %402 = vadd.xlane.f32.xlu0 %v401
      %v403 = vpop.xlane.xlu0 %402
      %v404 = vsel %vm217, %v323, 0.0
      %405 = vadd.xlane.f32.xlu0 %v404
      %v406 = vpop.xlane.xlu0 %405
      %v407 = vsel %vm217, %v326, 0.0
      %408 = vadd.xlane.f32.xlu0 %v407
      %v409 = vpop.xlane.xlu0 %408
      %v410 = vsel %vm217, %v329, 0.0
      %411 = vadd.xlane.f32.xlu0 %v410
      %v412 = vpop.xlane.xlu0 %411
      %v413 = vadd.f32 %v349, %v367
      %v414 = vadd.f32 %v350, %v370
      %v415 = vadd.f32 %v351, %v373
      %v416 = vadd.f32 %v352, %v376
      %v417 = vadd.f32 %v353, %v379
      %v418 = vadd.f32 %v354, %v382
      %v419 = vadd.f32 %v355, %v385
      %v420 = vadd.f32 %v356, %v388
      %v421 = vadd.f32 %v357, %v391
      %v422 = vadd.f32 %v358, %v394
      %v423 = vadd.f32 %v359, %v397
      %v424 = vadd.f32 %v360, %v400
      %v425 = vadd.f32 %v361, %v403
      %v426 = vadd.f32 %v362, %v406
      %v427 = vadd.f32 %v363, %v409
      %v428 = vadd.f32 %v364, %v412
      %vm429 = vcmask 7168
      %430 = vst.msk [vmem:[#allocation2] sm:$0xff] %vm429, %v413
      %431 = vst.msk [vmem:[#allocation2 + $0x8] sm:$0xff] %vm429, %v414
      %432 = vst.msk [vmem:[#allocation2 + $0x10] sm:$0xff] %vm429, %v415
      %433 = vst.msk [vmem:[#allocation2 + $0x18] sm:$0xff] %vm429, %v416
      %434 = vst.msk [vmem:[#allocation2 + $0x20] sm:$0xff] %vm429, %v417
      %435 = vst.msk [vmem:[#allocation2 + $0x28] sm:$0xff] %vm429, %v418
      %436 = vst.msk [vmem:[#allocation2 + $0x30] sm:$0xff] %vm429, %v419
      %437 = vst.msk [vmem:[#allocation2 + $0x38] sm:$0xff] %vm429, %v420
      %438 = vst.msk [vmem:[#allocation2 + $0x40] sm:$0xff] %vm429, %v421
      %439 = vst.msk [vmem:[#allocation2 + $0x48] sm:$0xff] %vm429, %v422
      %440 = vst.msk [vmem:[#allocation2 + $0x50] sm:$0xff] %vm429, %v423
      %441 = vst.msk [vmem:[#allocation2 + $0x58] sm:$0xff] %vm429, %v424
      %442 = vst.msk [vmem:[#allocation2 + $0x60] sm:$0xff] %vm429, %v425
      %443 = vst.msk [vmem:[#allocation2 + $0x68] sm:$0xff] %vm429, %v426
      %444 = vst.msk [vmem:[#allocation2 + $0x70] sm:$0xff] %vm429, %v427
      %445 = vst.msk [vmem:[#allocation2 + $0x78] sm:$0xff] %vm429, %v428
      %v446 = vld [vmem:[#allocation3] sm:$0xff]
      %v447 = vld [vmem:[#allocation3 + $0x8] sm:$0xff]
      %v448 = vld [vmem:[#allocation3 + $0x10] sm:$0xff]
      %v449 = vld [vmem:[#allocation3 + $0x18] sm:$0xff]
      %v450 = vld [vmem:[#allocation3 + $0x20] sm:$0xff]
      %v451 = vld [vmem:[#allocation3 + $0x28] sm:$0xff]
      %v452 = vld [vmem:[#allocation3 + $0x30] sm:$0xff]
      %v453 = vld [vmem:[#allocation3 + $0x38] sm:$0xff]
      %v454 = vld [vmem:[#allocation3 + $0x40] sm:$0xff]
      %v455 = vld [vmem:[#allocation3 + $0x48] sm:$0xff]
      %v456 = vld [vmem:[#allocation3 + $0x50] sm:$0xff]
      %v457 = vld [vmem:[#allocation3 + $0x58] sm:$0xff]
      %v458 = vld [vmem:[#allocation3 + $0x60] sm:$0xff]
      %v459 = vld [vmem:[#allocation3 + $0x68] sm:$0xff]
      %v460 = vld [vmem:[#allocation3 + $0x70] sm:$0xff]
      %v461 = vld [vmem:[#allocation3 + $0x78] sm:$0xff]
      %v462 = vmul.f32 %v284, %v284
      %v463 = vmul.f32 %v287, %v287
      %v464 = vmul.f32 %v290, %v290
      %v465 = vmul.f32 %v293, %v293
      %v466 = vmul.f32 %v296, %v296
      %v467 = vmul.f32 %v299, %v299
      %v468 = vmul.f32 %v302, %v302
      %v469 = vmul.f32 %v305, %v305
      %v470 = vmul.f32 %v308, %v308
      %v471 = vmul.f32 %v311, %v311
      %v472 = vmul.f32 %v314, %v314
      %v473 = vmul.f32 %v317, %v317
      %v474 = vmul.f32 %v320, %v320
      %v475 = vmul.f32 %v323, %v323
      %v476 = vmul.f32 %v326, %v326
      %v477 = vmul.f32 %v329, %v329
      %v478 = vsel %vm217, %v462, 0.0
      %479 = vadd.xlane.f32.xlu0 %v478
      %v480 = vpop.xlane.xlu0 %479
      %v481 = vsel %vm217, %v463, 0.0
      %482 = vadd.xlane.f32.xlu0 %v481
      %v483 = vpop.xlane.xlu0 %482
      %v484 = vsel %vm217, %v464, 0.0
      %485 = vadd.xlane.f32.xlu0 %v484
      %v486 = vpop.xlane.xlu0 %485
      %v487 = vsel %vm217, %v465, 0.0
      %488 = vadd.xlane.f32.xlu0 %v487
      %v489 = vpop.xlane.xlu0 %488
      %v490 = vsel %vm217, %v466, 0.0
      %491 = vadd.xlane.f32.xlu0 %v490
      %v492 = vpop.xlane.xlu0 %491
      %v493 = vsel %vm217, %v467, 0.0
      %494 = vadd.xlane.f32.xlu0 %v493
      %v495 = vpop.xlane.xlu0 %494
      %v496 = vsel %vm217, %v468, 0.0
      %497 = vadd.xlane.f32.xlu0 %v496
      %v498 = vpop.xlane.xlu0 %497
      %v499 = vsel %vm217, %v469, 0.0
      %500 = vadd.xlane.f32.xlu0 %v499
      %v501 = vpop.xlane.xlu0 %500
      %v502 = vsel %vm217, %v470, 0.0
      %503 = vadd.xlane.f32.xlu0 %v502
      %v504 = vpop.xlane.xlu0 %503
      %v505 = vsel %vm217, %v471, 0.0
      %506 = vadd.xlane.f32.xlu0 %v505
      %v507 = vpop.xlane.xlu0 %506
      %v508 = vsel %vm217, %v472, 0.0
      %509 = vadd.xlane.f32.xlu0 %v508
      %v510 = vpop.xlane.xlu0 %509
      %v511 = vsel %vm217, %v473, 0.0
      %512 = vadd.xlane.f32.xlu0 %v511
      %v513 = vpop.xlane.xlu0 %512
      %v514 = vsel %vm217, %v474, 0.0
      %515 = vadd.xlane.f32.xlu0 %v514
      %v516 = vpop.xlane.xlu0 %515
      %v517 = vsel %vm217, %v475, 0.0
      %518 = vadd.xlane.f32.xlu0 %v517
      %v519 = vpop.xlane.xlu0 %518
      %v520 = vsel %vm217, %v476, 0.0
      %521 = vadd.xlane.f32.xlu0 %v520
      %v522 = vpop.xlane.xlu0 %521
      %v523 = vsel %vm217, %v477, 0.0
      %524 = vadd.xlane.f32.xlu0 %v523
      %v525 = vpop.xlane.xlu0 %524
      %v526 = vadd.f32 %v446, %v480
      %v527 = vadd.f32 %v447, %v483
      %v528 = vadd.f32 %v448, %v486
      %v529 = vadd.f32 %v449, %v489
      %v530 = vadd.f32 %v450, %v492
      %v531 = vadd.f32 %v451, %v495
      %v532 = vadd.f32 %v452, %v498
      %v533 = vadd.f32 %v453, %v501
      %v534 = vadd.f32 %v454, %v504
      %v535 = vadd.f32 %v455, %v507
      %v536 = vadd.f32 %v456, %v510
      %v537 = vadd.f32 %v457, %v513
      %v538 = vadd.f32 %v458, %v516
      %v539 = vadd.f32 %v459, %v519
      %v540 = vadd.f32 %v460, %v522
      %v541 = vadd.f32 %v461, %v525
      %542 = vst.msk [vmem:[#allocation3] sm:$0xff] %vm429, %v526
      %543 = vst.msk [vmem:[#allocation3 + $0x8] sm:$0xff] %vm429, %v527
      %544 = vst.msk [vmem:[#allocation3 + $0x10] sm:$0xff] %vm429, %v528
      %545 = vst.msk [vmem:[#allocation3 + $0x18] sm:$0xff] %vm429, %v529
      %546 = vst.msk [vmem:[#allocation3 + $0x20] sm:$0xff] %vm429, %v530
      %547 = vst.msk [vmem:[#allocation3 + $0x28] sm:$0xff] %vm429, %v531
      %548 = vst.msk [vmem:[#allocation3 + $0x30] sm:$0xff] %vm429, %v532
      %549 = vst.msk [vmem:[#allocation3 + $0x38] sm:$0xff] %vm429, %v533
      %550 = vst.msk [vmem:[#allocation3 + $0x40] sm:$0xff] %vm429, %v534
      %551 = vst.msk [vmem:[#allocation3 + $0x48] sm:$0xff] %vm429, %v535
      %552 = vst.msk [vmem:[#allocation3 + $0x50] sm:$0xff] %vm429, %v536
      %553 = vst.msk [vmem:[#allocation3 + $0x58] sm:$0xff] %vm429, %v537
      %554 = vst.msk [vmem:[#allocation3 + $0x60] sm:$0xff] %vm429, %v538
      %555 = vst.msk [vmem:[#allocation3 + $0x68] sm:$0xff] %vm429, %v539
      %556 = vst.msk [vmem:[#allocation3 + $0x70] sm:$0xff] %vm429, %v540
      %557 = vst.msk [vmem:[#allocation3 + $0x78] sm:$0xff] %vm429, %v541
      %p558 = scmp.eq.s32.totalorder %s14, 1
      // Predicated region
      $region37: #{tpu_custom_call.1} parent=31 // pred_check
        %p559 = pneg %p558
      $region38: #{tpu_custom_call.1} parent=31 // pred_check_branch
        %561 = sbr.rel (%p559) target = $region40
      $region39: #{tpu_custom_call.1} parent=31 // pred_region
        %v562 = vld [vmem:[#allocation2] sm:$0xff]
        %v563 = vld [vmem:[#allocation2 + $0x8] sm:$0xff]
        %v564 = vld [vmem:[#allocation2 + $0x10] sm:$0xff]
        %v565 = vld [vmem:[#allocation2 + $0x18] sm:$0xff]
        %v566 = vld [vmem:[#allocation2 + $0x20] sm:$0xff]
        %v567 = vld [vmem:[#allocation2 + $0x28] sm:$0xff]
        %v568 = vld [vmem:[#allocation2 + $0x30] sm:$0xff]
        %v569 = vld [vmem:[#allocation2 + $0x38] sm:$0xff]
        %v570 = vld [vmem:[#allocation2 + $0x40] sm:$0xff]
        %v571 = vld [vmem:[#allocation2 + $0x48] sm:$0xff]
        %v572 = vld [vmem:[#allocation2 + $0x50] sm:$0xff]
        %v573 = vld [vmem:[#allocation2 + $0x58] sm:$0xff]
        %v574 = vld [vmem:[#allocation2 + $0x60] sm:$0xff]
        %v575 = vld [vmem:[#allocation2 + $0x68] sm:$0xff]
        %v576 = vld [vmem:[#allocation2 + $0x70] sm:$0xff]
        %v577 = vld [vmem:[#allocation2 + $0x78] sm:$0xff]
        %v578 = vmul.f32 %v562, 0.0078125
        %v579 = vmul.f32 %v563, 0.0078125
        %v580 = vmul.f32 %v564, 0.0078125
        %v581 = vmul.f32 %v565, 0.0078125
        %v582 = vmul.f32 %v566, 0.0078125
        %v583 = vmul.f32 %v567, 0.0078125
        %v584 = vmul.f32 %v568, 0.0078125
        %v585 = vmul.f32 %v569, 0.0078125
        %v586 = vmul.f32 %v570, 0.0078125
        %v587 = vmul.f32 %v571, 0.0078125
        %v588 = vmul.f32 %v572, 0.0078125
        %v589 = vmul.f32 %v573, 0.0078125
        %v590 = vmul.f32 %v574, 0.0078125
        %v591 = vmul.f32 %v575, 0.0078125
        %v592 = vmul.f32 %v576, 0.0078125
        %v593 = vmul.f32 %v577, 0.0078125
        %v594 = vld [vmem:[#allocation3] sm:$0xff]
        %v595 = vld [vmem:[#allocation3 + $0x8] sm:$0xff]
        %v596 = vld [vmem:[#allocation3 + $0x10] sm:$0xff]
        %v597 = vld [vmem:[#allocation3 + $0x18] sm:$0xff]
        %v598 = vld [vmem:[#allocation3 + $0x20] sm:$0xff]
        %v599 = vld [vmem:[#allocation3 + $0x28] sm:$0xff]
        %v600 = vld [vmem:[#allocation3 + $0x30] sm:$0xff]
        %v601 = vld [vmem:[#allocation3 + $0x38] sm:$0xff]
        %v602 = vld [vmem:[#allocation3 + $0x40] sm:$0xff]
        %v603 = vld [vmem:[#allocation3 + $0x48] sm:$0xff]
        %v604 = vld [vmem:[#allocation3 + $0x50] sm:$0xff]
        %v605 = vld [vmem:[#allocation3 + $0x58] sm:$0xff]
        %v606 = vld [vmem:[#allocation3 + $0x60] sm:$0xff]
        %v607 = vld [vmem:[#allocation3 + $0x68] sm:$0xff]
        %v608 = vld [vmem:[#allocation3 + $0x70] sm:$0xff]
        %v609 = vld [vmem:[#allocation3 + $0x78] sm:$0xff]
        %v610 = vmul.f32 %v594, 0.0078125
        %v611 = vmul.f32 %v595, 0.0078125
        %v612 = vmul.f32 %v596, 0.0078125
        %v613 = vmul.f32 %v597, 0.0078125
        %v614 = vmul.f32 %v598, 0.0078125
        %v615 = vmul.f32 %v599, 0.0078125
        %v616 = vmul.f32 %v600, 0.0078125
        %v617 = vmul.f32 %v601, 0.0078125
        %v618 = vmul.f32 %v602, 0.0078125
        %v619 = vmul.f32 %v603, 0.0078125
        %v620 = vmul.f32 %v604, 0.0078125
        %v621 = vmul.f32 %v605, 0.0078125
        %v622 = vmul.f32 %v606, 0.0078125
        %v623 = vmul.f32 %v607, 0.0078125
        %v624 = vmul.f32 %v608, 0.0078125
        %v625 = vmul.f32 %v609, 0.0078125
        %v626 = vmul.f32 %v578, %v578
        %v627 = vmul.f32 %v579, %v579
        %v628 = vmul.f32 %v580, %v580
        %v629 = vmul.f32 %v581, %v581
        %v630 = vmul.f32 %v582, %v582
        %v631 = vmul.f32 %v583, %v583
        %v632 = vmul.f32 %v584, %v584
        %v633 = vmul.f32 %v585, %v585
        %v634 = vmul.f32 %v586, %v586
        %v635 = vmul.f32 %v587, %v587
        %v636 = vmul.f32 %v588, %v588
        %v637 = vmul.f32 %v589, %v589
        %v638 = vmul.f32 %v590, %v590
        %v639 = vmul.f32 %v591, %v591
        %v640 = vmul.f32 %v592, %v592
        %v641 = vmul.f32 %v593, %v593
        %v642 = vsub.f32 %v610, %v626
        %v643 = vsub.f32 %v611, %v627
        %v644 = vsub.f32 %v612, %v628
        %v645 = vsub.f32 %v613, %v629
        %v646 = vsub.f32 %v614, %v630
        %v647 = vsub.f32 %v615, %v631
        %v648 = vsub.f32 %v616, %v632
        %v649 = vsub.f32 %v617, %v633
        %v650 = vsub.f32 %v618, %v634
        %v651 = vsub.f32 %v619, %v635
        %v652 = vsub.f32 %v620, %v636
        %v653 = vsub.f32 %v621, %v637
        %v654 = vsub.f32 %v622, %v638
        %v655 = vsub.f32 %v623, %v639
        %v656 = vsub.f32 %v624, %v640
        %v657 = vsub.f32 %v625, %v641
        %v658 = vmax.f32 %v642, 0.0
        %v659 = vmax.f32 %v643, 0.0
        %v660 = vmax.f32 %v644, 0.0
        %v661 = vmax.f32 %v645, 0.0
        %v662 = vmax.f32 %v646, 0.0
        %v663 = vmax.f32 %v647, 0.0
        %v664 = vmax.f32 %v648, 0.0
        %v665 = vmax.f32 %v649, 0.0
        %v666 = vmax.f32 %v650, 0.0
        %v667 = vmax.f32 %v651, 0.0
        %v668 = vmax.f32 %v652, 0.0
        %v669 = vmax.f32 %v653, 0.0
        %v670 = vmax.f32 %v654, 0.0
        %v671 = vmax.f32 %v655, 0.0
        %v672 = vmax.f32 %v656, 0.0
        %v673 = vmax.f32 %v657, 0.0
        %v674 = vld [vmem:[%s2] sm:$0xff]
        %v675 = vld [vmem:[%s2 + $0x8] sm:$0xff]
        %v676 = vld [vmem:[%s2 + $0x10] sm:$0xff]
        %v677 = vld [vmem:[%s2 + $0x18] sm:$0xff]
        %v678 = vld [vmem:[%s2 + $0x20] sm:$0xff]
        %v679 = vld [vmem:[%s2 + $0x28] sm:$0xff]
        %v680 = vld [vmem:[%s2 + $0x30] sm:$0xff]
        %v681 = vld [vmem:[%s2 + $0x38] sm:$0xff]
        %v682 = vld [vmem:[%s2 + $0x40] sm:$0xff]
        %v683 = vld [vmem:[%s2 + $0x48] sm:$0xff]
        %v684 = vld [vmem:[%s2 + $0x50] sm:$0xff]
        %v685 = vld [vmem:[%s2 + $0x58] sm:$0xff]
        %v686 = vld [vmem:[%s2 + $0x60] sm:$0xff]
        %v687 = vld [vmem:[%s2 + $0x68] sm:$0xff]
        %v688 = vld [vmem:[%s2 + $0x70] sm:$0xff]
        %v689 = vld [vmem:[%s2 + $0x78] sm:$0xff]
        %v690 = vadd.f32 %v658, 1e-05
        %v691 = vadd.f32 %v659, 1e-05
        %v692 = vadd.f32 %v660, 1e-05
        %v693 = vadd.f32 %v661, 1e-05
        %v694 = vadd.f32 %v662, 1e-05
        %v695 = vadd.f32 %v663, 1e-05
        %v696 = vadd.f32 %v664, 1e-05
        %v697 = vadd.f32 %v665, 1e-05
        %v698 = vadd.f32 %v666, 1e-05
        %v699 = vadd.f32 %v667, 1e-05
        %v700 = vadd.f32 %v668, 1e-05
        %v701 = vadd.f32 %v669, 1e-05
        %v702 = vadd.f32 %v670, 1e-05
        %v703 = vadd.f32 %v671, 1e-05
        %v704 = vadd.f32 %v672, 1e-05
        %v705 = vadd.f32 %v673, 1e-05
        %v706 = vrsqrt.pop %v690
        %v707 = vmul.f32 %v706, %v690
        %v708 = vmul.f32 %v707, %v706
        %v709 = vmul.f32 0.5, %v708
        %v710 = vsub.f32 1.5, %v709
        %v711 = vmul.f32 %v706, %v710
        %vm712 = vweird.f32 %v690
        %vm713 = vweird.f32 %v706
        %vm714 = vmor %vm712, %vm713
        %v715 = vsel %vm714, %v706, %v711
        %v716 = vrsqrt.pop %v691
        %v717 = vmul.f32 %v716, %v691
        %v718 = vmul.f32 %v717, %v716
        %v719 = vmul.f32 0.5, %v718
        %v720 = vsub.f32 1.5, %v719
        %v721 = vmul.f32 %v716, %v720
        %vm722 = vweird.f32 %v691
        %vm723 = vweird.f32 %v716
        %vm724 = vmor %vm722, %vm723
        %v725 = vsel %vm724, %v716, %v721
        %v726 = vrsqrt.pop %v692
        %v727 = vmul.f32 %v726, %v692
        %v728 = vmul.f32 %v727, %v726
        %v729 = vmul.f32 0.5, %v728
        %v730 = vsub.f32 1.5, %v729
        %v731 = vmul.f32 %v726, %v730
        %vm732 = vweird.f32 %v692
        %vm733 = vweird.f32 %v726
        %vm734 = vmor %vm732, %vm733
        %v735 = vsel %vm734, %v726, %v731
        %v736 = vrsqrt.pop %v693
        %v737 = vmul.f32 %v736, %v693
        %v738 = vmul.f32 %v737, %v736
        %v739 = vmul.f32 0.5, %v738
        %v740 = vsub.f32 1.5, %v739
        %v741 = vmul.f32 %v736, %v740
        %vm742 = vweird.f32 %v693
        %vm743 = vweird.f32 %v736
        %vm744 = vmor %vm742, %vm743
        %v745 = vsel %vm744, %v736, %v741
        %v746 = vrsqrt.pop %v694
        %v747 = vmul.f32 %v746, %v694
        %v748 = vmul.f32 %v747, %v746
        %v749 = vmul.f32 0.5, %v748
        %v750 = vsub.f32 1.5, %v749
        %v751 = vmul.f32 %v746, %v750
        %vm752 = vweird.f32 %v694
        %vm753 = vweird.f32 %v746
        %vm754 = vmor %vm752, %vm753
        %v755 = vsel %vm754, %v746, %v751
        %v756 = vrsqrt.pop %v695
        %v757 = vmul.f32 %v756, %v695
        %v758 = vmul.f32 %v757, %v756
        %v759 = vmul.f32 0.5, %v758
        %v760 = vsub.f32 1.5, %v759
        %v761 = vmul.f32 %v756, %v760
        %vm762 = vweird.f32 %v695
        %vm763 = vweird.f32 %v756
        %vm764 = vmor %vm762, %vm763
        %v765 = vsel %vm764, %v756, %v761
        %v766 = vrsqrt.pop %v696
        %v767 = vmul.f32 %v766, %v696
        %v768 = vmul.f32 %v767, %v766
        %v769 = vmul.f32 0.5, %v768
        %v770 = vsub.f32 1.5, %v769
        %v771 = vmul.f32 %v766, %v770
        %vm772 = vweird.f32 %v696
        %vm773 = vweird.f32 %v766
        %vm774 = vmor %vm772, %vm773
        %v775 = vsel %vm774, %v766, %v771
        %v776 = vrsqrt.pop %v697
        %v777 = vmul.f32 %v776, %v697
        %v778 = vmul.f32 %v777, %v776
        %v779 = vmul.f32 0.5, %v778
        %v780 = vsub.f32 1.5, %v779
        %v781 = vmul.f32 %v776, %v780
        %vm782 = vweird.f32 %v697
        %vm783 = vweird.f32 %v776
        %vm784 = vmor %vm782, %vm783
        %v785 = vsel %vm784, %v776, %v781
        %v786 = vrsqrt.pop %v698
        %v787 = vmul.f32 %v786, %v698
        %v788 = vmul.f32 %v787, %v786
        %v789 = vmul.f32 0.5, %v788
        %v790 = vsub.f32 1.5, %v789
        %v791 = vmul.f32 %v786, %v790
        %vm792 = vweird.f32 %v698
        %vm793 = vweird.f32 %v786
        %vm794 = vmor %vm792, %vm793
        %v795 = vsel %vm794, %v786, %v791
        %v796 = vrsqrt.pop %v699
        %v797 = vmul.f32 %v796, %v699
        %v798 = vmul.f32 %v797, %v796
        %v799 = vmul.f32 0.5, %v798
        %v800 = vsub.f32 1.5, %v799
        %v801 = vmul.f32 %v796, %v800
        %vm802 = vweird.f32 %v699
        %vm803 = vweird.f32 %v796
        %vm804 = vmor %vm802, %vm803
        %v805 = vsel %vm804, %v796, %v801
        %v806 = vrsqrt.pop %v700
        %v807 = vmul.f32 %v806, %v700
        %v808 = vmul.f32 %v807, %v806
        %v809 = vmul.f32 0.5, %v808
        %v810 = vsub.f32 1.5, %v809
        %v811 = vmul.f32 %v806, %v810
        %vm812 = vweird.f32 %v700
        %vm813 = vweird.f32 %v806
        %vm814 = vmor %vm812, %vm813
        %v815 = vsel %vm814, %v806, %v811
        %v816 = vrsqrt.pop %v701
        %v817 = vmul.f32 %v816, %v701
        %v818 = vmul.f32 %v817, %v816
        %v819 = vmul.f32 0.5, %v818
        %v820 = vsub.f32 1.5, %v819
        %v821 = vmul.f32 %v816, %v820
        %vm822 = vweird.f32 %v701
        %vm823 = vweird.f32 %v816
        %vm824 = vmor %vm822, %vm823
        %v825 = vsel %vm824, %v816, %v821
        %v826 = vrsqrt.pop %v702
        %v827 = vmul.f32 %v826, %v702
        %v828 = vmul.f32 %v827, %v826
        %v829 = vmul.f32 0.5, %v828
        %v830 = vsub.f32 1.5, %v829
        %v831 = vmul.f32 %v826, %v830
        %vm832 = vweird.f32 %v702
        %vm833 = vweird.f32 %v826
        %vm834 = vmor %vm832, %vm833
        %v835 = vsel %vm834, %v826, %v831
        %v836 = vrsqrt.pop %v703
        %v837 = vmul.f32 %v836, %v703
        %v838 = vmul.f32 %v837, %v836
        %v839 = vmul.f32 0.5, %v838
        %v840 = vsub.f32 1.5, %v839
        %v841 = vmul.f32 %v836, %v840
        %vm842 = vweird.f32 %v703
        %vm843 = vweird.f32 %v836
        %vm844 = vmor %vm842, %vm843
        %v845 = vsel %vm844, %v836, %v841
        %v846 = vrsqrt.pop %v704
        %v847 = vmul.f32 %v846, %v704
        %v848 = vmul.f32 %v847, %v846
        %v849 = vmul.f32 0.5, %v848
        %v850 = vsub.f32 1.5, %v849
        %v851 = vmul.f32 %v846, %v850
        %vm852 = vweird.f32 %v704
        %vm853 = vweird.f32 %v846
        %vm854 = vmor %vm852, %vm853
        %v855 = vsel %vm854, %v846, %v851
        %v856 = vrsqrt.pop %v705
        %v857 = vmul.f32 %v856, %v705
        %v858 = vmul.f32 %v857, %v856
        %v859 = vmul.f32 0.5, %v858
        %v860 = vsub.f32 1.5, %v859
        %v861 = vmul.f32 %v856, %v860
        %vm862 = vweird.f32 %v705
        %vm863 = vweird.f32 %v856
        %vm864 = vmor %vm862, %vm863
        %v865 = vsel %vm864, %v856, %v861
        %v866 = vmul.f32 %v674, %v715
        %v867 = vmul.f32 %v675, %v725
        %v868 = vmul.f32 %v676, %v735
        %v869 = vmul.f32 %v677, %v745
        %v870 = vmul.f32 %v678, %v755
        %v871 = vmul.f32 %v679, %v765
        %v872 = vmul.f32 %v680, %v775
        %v873 = vmul.f32 %v681, %v785
        %v874 = vmul.f32 %v682, %v795
        %v875 = vmul.f32 %v683, %v805
        %v876 = vmul.f32 %v684, %v815
        %v877 = vmul.f32 %v685, %v825
        %v878 = vmul.f32 %v686, %v835
        %v879 = vmul.f32 %v687, %v845
        %v880 = vmul.f32 %v688, %v855
        %v881 = vmul.f32 %v689, %v865
        %v882 = vmul.f32 %v578, %v866
        %v883 = vmul.f32 %v579, %v867
        %v884 = vmul.f32 %v580, %v868
        %v885 = vmul.f32 %v581, %v869
        %v886 = vmul.f32 %v582, %v870
        %v887 = vmul.f32 %v583, %v871
        %v888 = vmul.f32 %v584, %v872
        %v889 = vmul.f32 %v585, %v873
        %v890 = vmul.f32 %v586, %v874
        %v891 = vmul.f32 %v587, %v875
        %v892 = vmul.f32 %v588, %v876
        %v893 = vmul.f32 %v589, %v877
        %v894 = vmul.f32 %v590, %v878
        %v895 = vmul.f32 %v591, %v879
        %v896 = vmul.f32 %v592, %v880
        %v897 = vmul.f32 %v593, %v881
        %914 = vrot.lane.b32.xlu0 %v882, 1
        %v915 = vpop.permute.xlu0 %914
        %916 = vrot.lane.b32.xlu0 %v883, 1
        %v917 = vpop.permute.xlu0 %916
        %918 = vrot.lane.b32.xlu0 %v884, 1
        %v919 = vpop.permute.xlu0 %918
        %920 = vrot.lane.b32.xlu0 %v885, 1
        %v921 = vpop.permute.xlu0 %920
        %922 = vrot.lane.b32.xlu0 %v886, 1
        %v923 = vpop.permute.xlu0 %922
        %924 = vrot.lane.b32.xlu0 %v887, 1
        %v925 = vpop.permute.xlu0 %924
        %926 = vrot.lane.b32.xlu0 %v888, 1
        %v927 = vpop.permute.xlu0 %926
        %928 = vrot.lane.b32.xlu0 %v889, 1
        %v929 = vpop.permute.xlu0 %928
        %930 = vrot.lane.b32.xlu0 %v890, 1
        %v931 = vpop.permute.xlu0 %930
        %932 = vrot.lane.b32.xlu0 %v891, 1
        %v933 = vpop.permute.xlu0 %932
        %934 = vrot.lane.b32.xlu0 %v892, 1
        %v935 = vpop.permute.xlu0 %934
        %936 = vrot.lane.b32.xlu0 %v893, 1
        %v937 = vpop.permute.xlu0 %936
        %938 = vrot.lane.b32.xlu0 %v894, 1
        %v939 = vpop.permute.xlu0 %938
        %940 = vrot.lane.b32.xlu0 %v895, 1
        %v941 = vpop.permute.xlu0 %940
        %942 = vrot.lane.b32.xlu0 %v896, 1
        %v943 = vpop.permute.xlu0 %942
        %944 = vrot.lane.b32.xlu0 %v897, 1
        %v945 = vpop.permute.xlu0 %944
        %v962 = vsub.f32 %v674, %v915
        %v963 = vsub.f32 %v675, %v917
        %v964 = vsub.f32 %v676, %v919
        %v965 = vsub.f32 %v677, %v921
        %v966 = vsub.f32 %v678, %v923
        %v967 = vsub.f32 %v679, %v925
        %v968 = vsub.f32 %v680, %v927
        %v969 = vsub.f32 %v681, %v929
        %v970 = vsub.f32 %v682, %v931
        %v971 = vsub.f32 %v683, %v933
        %v972 = vsub.f32 %v684, %v935
        %v973 = vsub.f32 %v685, %v937
        %v974 = vsub.f32 %v686, %v939
        %v975 = vsub.f32 %v687, %v941
        %v976 = vsub.f32 %v688, %v943
        %v977 = vsub.f32 %v689, %v945
        %v978 = vld [vmem:[%s3] sm:$0xff]
        %v979 = vld [vmem:[%s3 + $0x8] sm:$0xff]
        %v980 = vld [vmem:[%s3 + $0x10] sm:$0xff]
        %v981 = vld [vmem:[%s3 + $0x18] sm:$0xff]
        %v982 = vld [vmem:[%s3 + $0x20] sm:$0xff]
        %v983 = vld [vmem:[%s3 + $0x28] sm:$0xff]
        %v984 = vld [vmem:[%s3 + $0x30] sm:$0xff]
        %v985 = vld [vmem:[%s3 + $0x38] sm:$0xff]
        %v986 = vld [vmem:[%s3 + $0x40] sm:$0xff]
        %v987 = vld [vmem:[%s3 + $0x48] sm:$0xff]
        %v988 = vld [vmem:[%s3 + $0x50] sm:$0xff]
        %v989 = vld [vmem:[%s3 + $0x58] sm:$0xff]
        %v990 = vld [vmem:[%s3 + $0x60] sm:$0xff]
        %v991 = vld [vmem:[%s3 + $0x68] sm:$0xff]
        %v992 = vld [vmem:[%s3 + $0x70] sm:$0xff]
        %v993 = vld [vmem:[%s3 + $0x78] sm:$0xff]
        %v994 = vld [vmem:[%s3 + $0x80] sm:$0xff]
        %v995 = vld [vmem:[%s3 + $0x88] sm:$0xff]
        %v996 = vld [vmem:[%s3 + $0x90] sm:$0xff]
        %v997 = vld [vmem:[%s3 + $0x98] sm:$0xff]
        %v998 = vld [vmem:[%s3 + $0xa0] sm:$0xff]
        %v999 = vld [vmem:[%s3 + $0xa8] sm:$0xff]
        %v1000 = vld [vmem:[%s3 + $0xb0] sm:$0xff]
        %v1001 = vld [vmem:[%s3 + $0xb8] sm:$0xff]
        %v1002 = vld [vmem:[%s3 + $0xc0] sm:$0xff]
        %v1003 = vld [vmem:[%s3 + $0xc8] sm:$0xff]
        %v1004 = vld [vmem:[%s3 + $0xd0] sm:$0xff]
        %v1005 = vld [vmem:[%s3 + $0xd8] sm:$0xff]
        %v1006 = vld [vmem:[%s3 + $0xe0] sm:$0xff]
        %v1007 = vld [vmem:[%s3 + $0xe8] sm:$0xff]
        %v1008 = vld [vmem:[%s3 + $0xf0] sm:$0xff]
        %v1009 = vld [vmem:[%s3 + $0xf8] sm:$0xff]
        %1011 = vset.pattern.permute.xlu0 0
        %1012 = vperm.xlu0 %1011, %v866
        %v1013 = vpop.permute.xlu0 %1012
        %1016 = vset.pattern.permute.xlu0 0
        %1017 = vperm.xlu0 %1016, %v867
        %v1018 = vpop.permute.xlu0 %1017
        %1021 = vset.pattern.permute.xlu0 0
        %1022 = vperm.xlu0 %1021, %v868
        %v1023 = vpop.permute.xlu0 %1022
        %1026 = vset.pattern.permute.xlu0 0
        %1027 = vperm.xlu0 %1026, %v869
        %v1028 = vpop.permute.xlu0 %1027
        %1031 = vset.pattern.permute.xlu0 0
        %1032 = vperm.xlu0 %1031, %v870
        %v1033 = vpop.permute.xlu0 %1032
        %1036 = vset.pattern.permute.xlu0 0
        %1037 = vperm.xlu0 %1036, %v871
        %v1038 = vpop.permute.xlu0 %1037
        %1041 = vset.pattern.permute.xlu0 0
        %1042 = vperm.xlu0 %1041, %v872
        %v1043 = vpop.permute.xlu0 %1042
        %1046 = vset.pattern.permute.xlu0 0
        %1047 = vperm.xlu0 %1046, %v873
        %v1048 = vpop.permute.xlu0 %1047
        %1051 = vset.pattern.permute.xlu0 0
        %1052 = vperm.xlu0 %1051, %v874
        %v1053 = vpop.permute.xlu0 %1052
        %1056 = vset.pattern.permute.xlu0 0
        %1057 = vperm.xlu0 %1056, %v875
        %v1058 = vpop.permute.xlu0 %1057
        %1061 = vset.pattern.permute.xlu0 0
        %1062 = vperm.xlu0 %1061, %v876
        %v1063 = vpop.permute.xlu0 %1062
        %1066 = vset.pattern.permute.xlu0 0
        %1067 = vperm.xlu0 %1066, %v877
        %v1068 = vpop.permute.xlu0 %1067
        %1071 = vset.pattern.permute.xlu0 0
        %1072 = vperm.xlu0 %1071, %v878
        %v1073 = vpop.permute.xlu0 %1072
        %1076 = vset.pattern.permute.xlu0 0
        %1077 = vperm.xlu0 %1076, %v879
        %v1078 = vpop.permute.xlu0 %1077
        %1081 = vset.pattern.permute.xlu0 0
        %1082 = vperm.xlu0 %1081, %v880
        %v1083 = vpop.permute.xlu0 %1082
        %1086 = vset.pattern.permute.xlu0 0
        %1087 = vperm.xlu0 %1086, %v881
        %v1088 = vpop.permute.xlu0 %1087
        %v1090 = vmul.f32 %v978, %v1013
        %v1091 = vmul.f32 %v979, %v1018
        %v1092 = vmul.f32 %v980, %v1023
        %v1093 = vmul.f32 %v981, %v1028
        %v1094 = vmul.f32 %v982, %v1033
        %v1095 = vmul.f32 %v983, %v1038
        %v1096 = vmul.f32 %v984, %v1043
        %v1097 = vmul.f32 %v985, %v1048
        %v1098 = vmul.f32 %v986, %v1053
        %v1099 = vmul.f32 %v987, %v1058
        %v1100 = vmul.f32 %v988, %v1063
        %v1101 = vmul.f32 %v989, %v1068
        %v1102 = vmul.f32 %v990, %v1073
        %v1103 = vmul.f32 %v991, %v1078
        %v1104 = vmul.f32 %v992, %v1083
        %v1105 = vmul.f32 %v993, %v1088
        %v1106 = vmul.f32 %v994, %v1013
        %v1107 = vmul.f32 %v995, %v1018
        %v1108 = vmul.f32 %v996, %v1023
        %v1109 = vmul.f32 %v997, %v1028
        %v1110 = vmul.f32 %v998, %v1033
        %v1111 = vmul.f32 %v999, %v1038
        %v1112 = vmul.f32 %v1000, %v1043
        %v1113 = vmul.f32 %v1001, %v1048
        %v1114 = vmul.f32 %v1002, %v1053
        %v1115 = vmul.f32 %v1003, %v1058
        %v1116 = vmul.f32 %v1004, %v1063
        %v1117 = vmul.f32 %v1005, %v1068
        %v1118 = vmul.f32 %v1006, %v1073
        %v1119 = vmul.f32 %v1007, %v1078
        %v1120 = vmul.f32 %v1008, %v1083
        %v1121 = vmul.f32 %v1009, %v1088
        %1123 = vset.pattern.permute.xlu0 1
        %1124 = vperm.xlu0 %1123, %v962
        %v1125 = vpop.permute.xlu0 %1124
        %1128 = vset.pattern.permute.xlu0 1
        %1129 = vperm.xlu0 %1128, %v963
        %v1130 = vpop.permute.xlu0 %1129
        %1133 = vset.pattern.permute.xlu0 1
        %1134 = vperm.xlu0 %1133, %v964
        %v1135 = vpop.permute.xlu0 %1134
        %1138 = vset.pattern.permute.xlu0 1
        %1139 = vperm.xlu0 %1138, %v965
        %v1140 = vpop.permute.xlu0 %1139
        %1143 = vset.pattern.permute.xlu0 1
        %1144 = vperm.xlu0 %1143, %v966
        %v1145 = vpop.permute.xlu0 %1144
        %1148 = vset.pattern.permute.xlu0 1
        %1149 = vperm.xlu0 %1148, %v967
        %v1150 = vpop.permute.xlu0 %1149
        %1153 = vset.pattern.permute.xlu0 1
        %1154 = vperm.xlu0 %1153, %v968
        %v1155 = vpop.permute.xlu0 %1154
        %1158 = vset.pattern.permute.xlu0 1
        %1159 = vperm.xlu0 %1158, %v969
        %v1160 = vpop.permute.xlu0 %1159
        %1163 = vset.pattern.permute.xlu0 1
        %1164 = vperm.xlu0 %1163, %v970
        %v1165 = vpop.permute.xlu0 %1164
        %1168 = vset.pattern.permute.xlu0 1
        %1169 = vperm.xlu0 %1168, %v971
        %v1170 = vpop.permute.xlu0 %1169
        %1173 = vset.pattern.permute.xlu0 1
        %1174 = vperm.xlu0 %1173, %v972
        %v1175 = vpop.permute.xlu0 %1174
        %1178 = vset.pattern.permute.xlu0 1
        %1179 = vperm.xlu0 %1178, %v973
        %v1180 = vpop.permute.xlu0 %1179
        %1183 = vset.pattern.permute.xlu0 1
        %1184 = vperm.xlu0 %1183, %v974
        %v1185 = vpop.permute.xlu0 %1184
        %1188 = vset.pattern.permute.xlu0 1
        %1189 = vperm.xlu0 %1188, %v975
        %v1190 = vpop.permute.xlu0 %1189
        %1193 = vset.pattern.permute.xlu0 1
        %1194 = vperm.xlu0 %1193, %v976
        %v1195 = vpop.permute.xlu0 %1194
        %1198 = vset.pattern.permute.xlu0 1
        %1199 = vperm.xlu0 %1198, %v977
        %v1200 = vpop.permute.xlu0 %1199
        %v1202 = vadd.f32 %v1090, %v1125
        %v1203 = vadd.f32 %v1091, %v1130
        %v1204 = vadd.f32 %v1092, %v1135
        %v1205 = vadd.f32 %v1093, %v1140
        %v1206 = vadd.f32 %v1094, %v1145
        %v1207 = vadd.f32 %v1095, %v1150
        %v1208 = vadd.f32 %v1096, %v1155
        %v1209 = vadd.f32 %v1097, %v1160
        %v1210 = vadd.f32 %v1098, %v1165
        %v1211 = vadd.f32 %v1099, %v1170
        %v1212 = vadd.f32 %v1100, %v1175
        %v1213 = vadd.f32 %v1101, %v1180
        %v1214 = vadd.f32 %v1102, %v1185
        %v1215 = vadd.f32 %v1103, %v1190
        %v1216 = vadd.f32 %v1104, %v1195
        %v1217 = vadd.f32 %v1105, %v1200
        %v1218 = vadd.f32 %v1106, %v1125
        %v1219 = vadd.f32 %v1107, %v1130
        %v1220 = vadd.f32 %v1108, %v1135
        %v1221 = vadd.f32 %v1109, %v1140
        %v1222 = vadd.f32 %v1110, %v1145
        %v1223 = vadd.f32 %v1111, %v1150
        %v1224 = vadd.f32 %v1112, %v1155
        %v1225 = vadd.f32 %v1113, %v1160
        %v1226 = vadd.f32 %v1114, %v1165
        %v1227 = vadd.f32 %v1115, %v1170
        %v1228 = vadd.f32 %v1116, %v1175
        %v1229 = vadd.f32 %v1117, %v1180
        %v1230 = vadd.f32 %v1118, %v1185
        %v1231 = vadd.f32 %v1119, %v1190
        %v1232 = vadd.f32 %v1120, %v1195
        %v1233 = vadd.f32 %v1121, %v1200
        %1234 = vst.msk [vmem:[%s3] sm:$0xff] %vm217, %v1202
        %1235 = vst.msk [vmem:[%s3 + $0x8] sm:$0xff] %vm217, %v1203
        %1236 = vst.msk [vmem:[%s3 + $0x10] sm:$0xff] %vm217, %v1204
        %1237 = vst.msk [vmem:[%s3 + $0x18] sm:$0xff] %vm217, %v1205
        %1238 = vst.msk [vmem:[%s3 + $0x20] sm:$0xff] %vm217, %v1206
        %1239 = vst.msk [vmem:[%s3 + $0x28] sm:$0xff] %vm217, %v1207
        %1240 = vst.msk [vmem:[%s3 + $0x30] sm:$0xff] %vm217, %v1208
        %1241 = vst.msk [vmem:[%s3 + $0x38] sm:$0xff] %vm217, %v1209
        %1242 = vst.msk [vmem:[%s3 + $0x40] sm:$0xff] %vm217, %v1210
        %1243 = vst.msk [vmem:[%s3 + $0x48] sm:$0xff] %vm217, %v1211
        %1244 = vst.msk [vmem:[%s3 + $0x50] sm:$0xff] %vm217, %v1212
        %1245 = vst.msk [vmem:[%s3 + $0x58] sm:$0xff] %vm217, %v1213
        %1246 = vst.msk [vmem:[%s3 + $0x60] sm:$0xff] %vm217, %v1214
        %1247 = vst.msk [vmem:[%s3 + $0x68] sm:$0xff] %vm217, %v1215
        %1248 = vst.msk [vmem:[%s3 + $0x70] sm:$0xff] %vm217, %v1216
        %1249 = vst.msk [vmem:[%s3 + $0x78] sm:$0xff] %vm217, %v1217
        %1250 = vst.msk [vmem:[%s3 + $0x80] sm:$0xff] %vm217, %v1218
        %1251 = vst.msk [vmem:[%s3 + $0x88] sm:$0xff] %vm217, %v1219
        %1252 = vst.msk [vmem:[%s3 + $0x90] sm:$0xff] %vm217, %v1220
        %1253 = vst.msk [vmem:[%s3 + $0x98] sm:$0xff] %vm217, %v1221
        %1254 = vst.msk [vmem:[%s3 + $0xa0] sm:$0xff] %vm217, %v1222
        %1255 = vst.msk [vmem:[%s3 + $0xa8] sm:$0xff] %vm217, %v1223
        %1256 = vst.msk [vmem:[%s3 + $0xb0] sm:$0xff] %vm217, %v1224
        %1257 = vst.msk [vmem:[%s3 + $0xb8] sm:$0xff] %vm217, %v1225
        %1258 = vst.msk [vmem:[%s3 + $0xc0] sm:$0xff] %vm217, %v1226
        %1259 = vst.msk [vmem:[%s3 + $0xc8] sm:$0xff] %vm217, %v1227
        %1260 = vst.msk [vmem:[%s3 + $0xd0] sm:$0xff] %vm217, %v1228
        %1261 = vst.msk [vmem:[%s3 + $0xd8] sm:$0xff] %vm217, %v1229
        %1262 = vst.msk [vmem:[%s3 + $0xe0] sm:$0xff] %vm217, %v1230
        %1263 = vst.msk [vmem:[%s3 + $0xe8] sm:$0xff] %vm217, %v1231
        %1264 = vst.msk [vmem:[%s3 + $0xf0] sm:$0xff] %vm217, %v1232
        %1265 = vst.msk [vmem:[%s3 + $0xf8] sm:$0xff] %vm217, %v1233
      $region40: #{tpu_custom_call.1} parent=31 // pred_fallthru
        _
      // Predicated region
      $region41: #{tpu_custom_call.1} parent=31 // pred_check
        %p1266 = pneg %p95
      $region42: #{tpu_custom_call.1} parent=31 // pred_check_branch
        %1268 = sbr.rel (%p1266) target = $region44
      $region43: #{tpu_custom_call.1} parent=31 // pred_region
        _
      $region44: #{tpu_custom_call.1} parent=31 // pred_fallthru
        _
      // Predicated region
      $region45: #{tpu_custom_call.1} parent=31 // pred_check
        %p1269 = pneg %p95
      $region46: #{tpu_custom_call.1} parent=31 // pred_check_branch
        %1271 = sbr.rel (%p1269) target = $region48
      $region47: #{tpu_custom_call.1} parent=31 // pred_region
        _
      $region48: #{tpu_custom_call.1} parent=31 // pred_fallthru
        _
    $region32: #{tpu_custom_call.1} parent=5 // pred_fallthru
      _
    %p1272 = scmp.le.s32.totalorder 2, %s9
    // Predicated region
    $region49: #{tpu_custom_call.1} parent=5 // pred_check
      %p1273 = pneg %p1272
    $region50: #{tpu_custom_call.1} parent=5 // pred_check_branch
      %1275 = sbr.rel (%p1273) target = $region52
    $region51: #{tpu_custom_call.1} parent=5 // pred_region
      %s1276 = ssub.s32 %s9, 2
    $region52: #{tpu_custom_call.1} parent=5 // pred_fallthru
      _
  $region6: #{tpu_custom_call.1} parent=0 // loop_footer
    %s13 = sadd.s32 1, %s9
  $region7: #{tpu_custom_call.1} parent=0 // loop_footer_branch
    %8 = sbr.rel target = $region3
  $region8: #{tpu_custom_call.1} parent=0 // loop_exit
    _

</llo_original>
